<compile_context>
chip_gen: v6e
topology: v6e:2x2x1
jax: 0.10.0
libtpu: 0.0.40
codegen_flags: <defaults>
</compile_context>

<pallas_src>
import jax
import jax.numpy as jnp
from jax.experimental import pallas as pl
from jax.experimental.pallas import tpu as pltpu


# ---------------------------------------------------------------------------
# Helpers
# ---------------------------------------------------------------------------
def _as_2d(x):
    """Normalise a prediction tensor to 2-D for the kernel.

    rank-2 tensors pass through untouched (no copy).  rank>2 collapses the
    leading dims (a bitcast when the collapsed sublane extent already tiles to
    8, otherwise a tiny per-segment copy that also removes degenerate-sublane
    VMEM padding).  rank 0/1 get a leading unit dim.
    """
    if x.ndim == 2:
        return x
    if x.ndim == 0:
        return x.reshape(1, 1)
    if x.ndim == 1:
        return x.reshape(1, x.shape[0])
    return x.reshape(-1, x.shape[-1])


def _make_kernel(num_segments, inv_counts):
    """Builds the fused loss kernel for a fixed list of segments.

    refs = (t_0..t_{n-1}, g_0..g_{n-1}, o).  Each segment is summed in full
    (VPU elementwise + one XLU reduce per segment) and scaled by its
    compile-time 1/N_i; the f32 scalar accumulator lives in registers.
    """

    def kernel(*refs):
        t_refs = refs[:num_segments]
        g_refs = refs[num_segments:2 * num_segments]
        o_ref = refs[2 * num_segments]

        total = jnp.zeros((), jnp.float32)
        for t_ref, g_ref, inv_n in zip(t_refs, g_refs, inv_counts):
            t = t_ref[...].astype(jnp.float32)
            g = g_ref[...].astype(jnp.float32)
            d = t - 1.0
            total = total + inv_n * jnp.sum(d * d + g * g)

        o_ref[...] = total.reshape(1, 1)

    return kernel


# ---------------------------------------------------------------------------
# Wrapper
# ---------------------------------------------------------------------------
def hifi_discriminator_loss(discr_preds_generated, discr_preds_true):
    """Forward pass of HiFiDiscriminatorLoss (scalar f32)."""
    assert len(discr_preds_generated) == len(discr_preds_true)
    nseg = len(discr_preds_generated)
    if nseg == 0:
        return jnp.float32(0.0)

    t_in, g_in, inv_counts = [], [], []
    for t, g in zip(discr_preds_true, discr_preds_generated):
        assert t.shape == g.shape, (t.shape, g.shape)
        n = 1
        for s in t.shape:
            n *= int(s)
        inv_counts.append(1.0 / float(n))
        t_in.append(_as_2d(t))
        g_in.append(_as_2d(g))

    vmem_spec = pl.BlockSpec(memory_space=pltpu.MemorySpace.VMEM)
    out = pl.pallas_call(
        _make_kernel(nseg, tuple(inv_counts)),
        out_shape=jax.ShapeDtypeStruct((1, 1), jnp.float32),
        in_specs=[vmem_spec] * (2 * nseg),
        out_specs=vmem_spec,
        compiler_params=pltpu.CompilerParams(
            vmem_limit_bytes=32 * 1024 * 1024,
        ),
    )(*t_in, *g_in)
    return out[0, 0]


# ---------------------------------------------------------------------------
# Pure-JAX reference for verification
# ---------------------------------------------------------------------------
def hifi_discriminator_loss_ref(discr_preds_generated, discr_preds_true):
    loss = jnp.float32(0.0)
    for g, t in zip(discr_preds_generated, discr_preds_true):
        tf = t.astype(jnp.float32)
        gf = g.astype(jnp.float32)
        loss = loss + jnp.mean((tf - 1.0) ** 2 + gf ** 2)
    return loss


if __name__ == "__main__":
    key = jax.random.PRNGKey(0)
    ks = jax.random.split(key, 8)

    # Discriminator outputs (e.g. 4 sub-discriminators) for generated and
    # true audio.  Mixed ranks / non-128-multiple sizes exercise the
    # no-padding, full-array path.
    shapes = [(2, 64), (2, 32), (2, 16), (2, 1, 5000)]
    discr_preds_generated = [
        jax.random.normal(ks[i], s, dtype=jnp.float32)
        for i, s in enumerate(shapes)
    ]
    discr_preds_true = [
        jax.random.normal(ks[4 + i], s, dtype=jnp.float32)
        for i, s in enumerate(shapes)
    ]

    loss = jax.block_until_ready(
        hifi_discriminator_loss(discr_preds_generated, discr_preds_true)
    )
    ref = hifi_discriminator_loss_ref(discr_preds_generated, discr_preds_true)
    assert jnp.allclose(loss, ref, rtol=1e-5, atol=1e-5), (loss, ref)

    print("KERNEL_OK")
</pallas_src>

<mosaic_0001>
module attributes {stable_mosaic.version = 11 : i64} {
  func.func @kernel(%arg0: memref<2x64xf32, #tpu.memory_space<vmem>>, %arg1: memref<2x32xf32, #tpu.memory_space<vmem>>, %arg2: memref<2x16xf32, #tpu.memory_space<vmem>>, %arg3: memref<2x5000xf32, #tpu.memory_space<vmem>>, %arg4: memref<2x64xf32, #tpu.memory_space<vmem>>, %arg5: memref<2x32xf32, #tpu.memory_space<vmem>>, %arg6: memref<2x16xf32, #tpu.memory_space<vmem>>, %arg7: memref<2x5000xf32, #tpu.memory_space<vmem>>, %arg8: memref<1x1xf32, #tpu.memory_space<vmem>>) attributes {dimension_semantics = [], scalar_prefetch = 0 : i64, scratch_operands = 0 : i64, tpu.core_type = #tpu.core_type<tc>} {
    %c0 = arith.constant 0 : index
    %c0_0 = arith.constant 0 : index
    %0 = vector.load %arg0[%c0, %c0_0] : memref<2x64xf32, #tpu.memory_space<vmem>>, vector<2x64xf32>
    %c0_1 = arith.constant 0 : index
    %c0_2 = arith.constant 0 : index
    %1 = vector.load %arg4[%c0_1, %c0_2] : memref<2x64xf32, #tpu.memory_space<vmem>>, vector<2x64xf32>
    %cst = arith.constant 1.000000e+00 : f32
    %2 = vector.broadcast %cst : f32 to vector<2x64xf32>
    %3 = arith.subf %0, %2 : vector<2x64xf32>
    %4 = arith.mulf %3, %3 : vector<2x64xf32>
    %5 = arith.mulf %1, %1 : vector<2x64xf32>
    %6 = arith.addf %4, %5 : vector<2x64xf32>
    %7 = vector.shape_cast %6 : vector<2x64xf32> to vector<1x2x64xf32>
    %cst_3 = arith.constant dense<0.000000e+00> : vector<1xf32>
    %8 = vector.multi_reduction <add>, %7, %cst_3 [1, 2] : vector<1x2x64xf32> to vector<1xf32>
    %9 = vector.shape_cast %8 : vector<1xf32> to vector<1x1x1xf32>
    %10 = vector.extract %9[0, 0, 0] : f32 from vector<1x1x1xf32>
    %cst_4 = arith.constant 7.812500e-03 : f32
    %11 = arith.mulf %cst_4, %10 : f32
    %cst_5 = arith.constant 0.000000e+00 : f32
    %12 = arith.addf %cst_5, %11 : f32
    %c0_6 = arith.constant 0 : index
    %c0_7 = arith.constant 0 : index
    %13 = vector.load %arg1[%c0_6, %c0_7] : memref<2x32xf32, #tpu.memory_space<vmem>>, vector<2x32xf32>
    %c0_8 = arith.constant 0 : index
    %c0_9 = arith.constant 0 : index
    %14 = vector.load %arg5[%c0_8, %c0_9] : memref<2x32xf32, #tpu.memory_space<vmem>>, vector<2x32xf32>
    %cst_10 = arith.constant 1.000000e+00 : f32
    %15 = vector.broadcast %cst_10 : f32 to vector<2x32xf32>
    %16 = arith.subf %13, %15 : vector<2x32xf32>
    %17 = arith.mulf %16, %16 : vector<2x32xf32>
    %18 = arith.mulf %14, %14 : vector<2x32xf32>
    %19 = arith.addf %17, %18 : vector<2x32xf32>
    %20 = vector.shape_cast %19 : vector<2x32xf32> to vector<1x2x32xf32>
    %cst_11 = arith.constant dense<0.000000e+00> : vector<1xf32>
    %21 = vector.multi_reduction <add>, %20, %cst_11 [1, 2] : vector<1x2x32xf32> to vector<1xf32>
    %22 = vector.shape_cast %21 : vector<1xf32> to vector<1x1x1xf32>
    %23 = vector.extract %22[0, 0, 0] : f32 from vector<1x1x1xf32>
    %cst_12 = arith.constant 1.562500e-02 : f32
    %24 = arith.mulf %cst_12, %23 : f32
    %25 = arith.addf %12, %24 : f32
    %c0_13 = arith.constant 0 : index
    %c0_14 = arith.constant 0 : index
    %26 = vector.load %arg2[%c0_13, %c0_14] : memref<2x16xf32, #tpu.memory_space<vmem>>, vector<2x16xf32>
    %c0_15 = arith.constant 0 : index
    %c0_16 = arith.constant 0 : index
    %27 = vector.load %arg6[%c0_15, %c0_16] : memref<2x16xf32, #tpu.memory_space<vmem>>, vector<2x16xf32>
    %cst_17 = arith.constant 1.000000e+00 : f32
    %28 = vector.broadcast %cst_17 : f32 to vector<2x16xf32>
    %29 = arith.subf %26, %28 : vector<2x16xf32>
    %30 = arith.mulf %29, %29 : vector<2x16xf32>
    %31 = arith.mulf %27, %27 : vector<2x16xf32>
    %32 = arith.addf %30, %31 : vector<2x16xf32>
    %33 = vector.shape_cast %32 : vector<2x16xf32> to vector<1x2x16xf32>
    %cst_18 = arith.constant dense<0.000000e+00> : vector<1xf32>
    %34 = vector.multi_reduction <add>, %33, %cst_18 [1, 2] : vector<1x2x16xf32> to vector<1xf32>
    %35 = vector.shape_cast %34 : vector<1xf32> to vector<1x1x1xf32>
    %36 = vector.extract %35[0, 0, 0] : f32 from vector<1x1x1xf32>
    %cst_19 = arith.constant 3.125000e-02 : f32
    %37 = arith.mulf %cst_19, %36 : f32
    %38 = arith.addf %25, %37 : f32
    %c0_20 = arith.constant 0 : index
    %c0_21 = arith.constant 0 : index
    %39 = vector.load %arg3[%c0_20, %c0_21] : memref<2x5000xf32, #tpu.memory_space<vmem>>, vector<2x5000xf32>
    %c0_22 = arith.constant 0 : index
    %c0_23 = arith.constant 0 : index
    %40 = vector.load %arg7[%c0_22, %c0_23] : memref<2x5000xf32, #tpu.memory_space<vmem>>, vector<2x5000xf32>
    %cst_24 = arith.constant 1.000000e+00 : f32
    %41 = vector.broadcast %cst_24 : f32 to vector<2x5000xf32>
    %42 = arith.subf %39, %41 : vector<2x5000xf32>
    %43 = arith.mulf %42, %42 : vector<2x5000xf32>
    %44 = arith.mulf %40, %40 : vector<2x5000xf32>
    %45 = arith.addf %43, %44 : vector<2x5000xf32>
    %46 = vector.shape_cast %45 : vector<2x5000xf32> to vector<1x2x5000xf32>
    %cst_25 = arith.constant dense<0.000000e+00> : vector<1xf32>
    %47 = vector.multi_reduction <add>, %46, %cst_25 [1, 2] : vector<1x2x5000xf32> to vector<1xf32>
    %48 = vector.shape_cast %47 : vector<1xf32> to vector<1x1x1xf32>
    %49 = vector.extract %48[0, 0, 0] : f32 from vector<1x1x1xf32>
    %cst_26 = arith.constant 9.99999974E-5 : f32
    %50 = arith.mulf %cst_26, %49 : f32
    %51 = arith.addf %38, %50 : f32
    %52 = vector.broadcast %51 : f32 to vector<1x1xf32>
    %c0_27 = arith.constant 0 : index
    %c0_28 = arith.constant 0 : index
    %53 = vector.load %arg8[%c0_27, %c0_28] : memref<1x1xf32, #tpu.memory_space<vmem>>, vector<1x1xf32>
    tpu.vector_store %arg8[%c0_27, %c0_28], %52 {strides = array<i32>} : memref<1x1xf32, #tpu.memory_space<vmem>>, vector<1x1xf32>,
    return
  }
}

</mosaic_0001>

<llo_original>
// kernel: tpu_custom_call.1
$region0: #{tpu_custom_call.1}
  #allocation0 [shape = 'u32[]', space=smem, size = 0x4, offset = 0x4, fixed_abs, tag = 'smem constant byte address 0x4 - core index']
  #allocation1 [shape = 'u32[144,128]{1,0:T(1,128)}', space=vmem, size = 0x12000, scoped, tag = 'internal scratch']
  %s0 = inlined_call_operand.hbm [shape: f32[2,64], index: 0, kind: input, shape index: {}]
  %s1 = inlined_call_operand.hbm [shape: f32[2,32], index: 1, kind: input, shape index: {}]
  %s2 = inlined_call_operand.vmem [shape: f32[2,16], index: 2, kind: input, shape index: {}]
  %s3 = inlined_call_operand.hbm [shape: f32[2,5000], index: 3, kind: input, shape index: {}]
  %s4 = inlined_call_operand.vmem [shape: f32[2,64], index: 4, kind: input, shape index: {}]
  %s5 = inlined_call_operand.vmem [shape: f32[2,32], index: 5, kind: input, shape index: {}]
  %s6 = inlined_call_operand.vmem [shape: f32[2,16], index: 6, kind: input, shape index: {}]
  %s7 = inlined_call_operand.hbm [shape: f32[2,5000], index: 7, kind: input, shape index: {}]
  %s8 = inlined_call_operand.hbm [shape: f32[1,1], index: 8, kind: output, shape index: {}]
  %s9 = sld [smem:[#allocation0]]
  $region58: #{tpu_custom_call.1} parent=0
    _
  %s11 = ssub.s32 1, %s9
  %s12 = scalar_select 0, %s11, %s9
  $region1: #{tpu_custom_call.1} parent=0
    #allocation2 [shape = 'u8[1024]{0}', space=vmem, size = 0x400, scoped, tag = 'input window, operand 0, single buffered']
    #allocation3 [shape = 's32[1]{0}', space=sflag, size = 0x4, scoped, tag = 'scoped memory for tpu_custom_call.1']
    #allocation4 [shape = 's32[1]{0}', space=sflag, size = 0x4, scoped, tag = 'scoped memory for tpu_custom_call.1']
    #allocation5 [shape = 'u8[1024]{0}', space=vmem, size = 0x400, scoped, tag = 'input window, operand 1, single buffered']
    #allocation6 [shape = 's32[1]{0}', space=sflag, size = 0x4, scoped, tag = 'scoped memory for tpu_custom_call.1']
    #allocation7 [shape = 'u8[40960]{0}', space=vmem, size = 0xa000, scoped, tag = 'input window, operand 3, single buffered']
    #allocation8 [shape = 'u8[40960]{0}', space=vmem, size = 0xa000, scoped, tag = 'input window, operand 7, single buffered']
    #allocation9 [shape = 's32[1]{0}', space=sflag, size = 0x4, scoped, tag = 'scoped memory for tpu_custom_call.1']
    #allocation10 [shape = 'u8[512]{0}', space=vmem, size = 0x400, scoped, tag = 'output window, operand 0, single buffered']
    %13 = vsyncpa [#allocation3], 0
    %14 = vsyncpa [#allocation6], 0
    %15 = vsyncpa [#allocation9], 0
    %16 = vsyncpa [#allocation4], 0
    // Predicated region
    $region2: #{tpu_custom_call.1} parent=1 // pred_check
      _
    $region3: #{tpu_custom_call.1} parent=1 // pred_check_branch
      %18 = sbr.rel (0) target = $region5
    $region4: #{tpu_custom_call.1} parent=1 // pred_region
      %s20 = ssub.s32 32, 32
      %21 = vsyncadd [#allocation3], %s20
      %s23 = sshll.u32 [#allocation2], 4
      %s24 = int_to_ptr.vmem [resolvable:$true] %s23
      %26 = dma.hbm_to_vmem [thread:$0]  %s0, 32, %s24, [#allocation3]
    $region5: #{tpu_custom_call.1} parent=1 // pred_fallthru
      _
    // Predicated region
    $region6: #{tpu_custom_call.1} parent=1 // pred_check
      _
    $region7: #{tpu_custom_call.1} parent=1 // pred_check_branch
      %28 = sbr.rel (0) target = $region9
    $region8: #{tpu_custom_call.1} parent=1 // pred_region
      %s30 = ssub.s32 32, 32
      %31 = vsyncadd [#allocation6], %s30
      %s33 = sshll.u32 [#allocation5], 4
      %s34 = int_to_ptr.vmem [resolvable:$true] %s33
      %36 = dma.hbm_to_vmem [thread:$0]  %s1, 32, %s34, [#allocation6]
    $region9: #{tpu_custom_call.1} parent=1 // pred_fallthru
      _
    // Predicated region
    $region10: #{tpu_custom_call.1} parent=1 // pred_check
      _
    $region11: #{tpu_custom_call.1} parent=1 // pred_check_branch
      %38 = sbr.rel (0) target = $region13
    $region12: #{tpu_custom_call.1} parent=1 // pred_region
      _
    $region13: #{tpu_custom_call.1} parent=1 // pred_fallthru
      _
    // Predicated region
    $region14: #{tpu_custom_call.1} parent=1 // pred_check
      _
    $region15: #{tpu_custom_call.1} parent=1 // pred_check_branch
      %40 = sbr.rel (0) target = $region17
    $region16: #{tpu_custom_call.1} parent=1 // pred_region
      %s42 = ssub.s32 1280, 1280
      %43 = vsyncadd [#allocation6], %s42
      %s45 = sshll.u32 [#allocation7], 4
      %s46 = int_to_ptr.vmem [resolvable:$true] %s45
      %48 = dma.hbm_to_vmem [thread:$0]  %s3, 1280, %s46, [#allocation6]
    $region17: #{tpu_custom_call.1} parent=1 // pred_fallthru
      _
    // Predicated region
    $region18: #{tpu_custom_call.1} parent=1 // pred_check
      _
    $region19: #{tpu_custom_call.1} parent=1 // pred_check_branch
      %50 = sbr.rel (0) target = $region21
    $region20: #{tpu_custom_call.1} parent=1 // pred_region
      _
    $region21: #{tpu_custom_call.1} parent=1 // pred_fallthru
      _
    // Predicated region
    $region22: #{tpu_custom_call.1} parent=1 // pred_check
      _
    $region23: #{tpu_custom_call.1} parent=1 // pred_check_branch
      %52 = sbr.rel (0) target = $region25
    $region24: #{tpu_custom_call.1} parent=1 // pred_region
      _
    $region25: #{tpu_custom_call.1} parent=1 // pred_fallthru
      _
    // Predicated region
    $region26: #{tpu_custom_call.1} parent=1 // pred_check
      _
    $region27: #{tpu_custom_call.1} parent=1 // pred_check_branch
      %54 = sbr.rel (0) target = $region29
    $region28: #{tpu_custom_call.1} parent=1 // pred_region
      _
    $region29: #{tpu_custom_call.1} parent=1 // pred_fallthru
      _
    // Predicated region
    $region30: #{tpu_custom_call.1} parent=1 // pred_check
      _
    $region31: #{tpu_custom_call.1} parent=1 // pred_check_branch
      %56 = sbr.rel (0) target = $region33
    $region32: #{tpu_custom_call.1} parent=1 // pred_region
      %s58 = ssub.s32 1280, 1280
      %59 = vsyncadd [#allocation9], %s58
      %s61 = sshll.u32 [#allocation8], 4
      %s62 = int_to_ptr.vmem [resolvable:$true] %s61
      %64 = dma.hbm_to_vmem [thread:$0]  %s7, 1280, %s62, [#allocation9]
    $region33: #{tpu_custom_call.1} parent=1 // pred_fallthru
      _
    // Predicated region
    $region34: #{tpu_custom_call.1} parent=1 // pred_check
      _
    $region35: #{tpu_custom_call.1} parent=1 // pred_check_branch
      %66 = sbr.rel (0) target = $region37
    $region36: #{tpu_custom_call.1} parent=1 // pred_region
      %67 = dma.done [#allocation3], 32
    $region37: #{tpu_custom_call.1} parent=1 // pred_fallthru
      _
    // Predicated region
    $region38: #{tpu_custom_call.1} parent=1 // pred_check
      _
    $region39: #{tpu_custom_call.1} parent=1 // pred_check_branch
      %69 = sbr.rel (0) target = $region41
    $region40: #{tpu_custom_call.1} parent=1 // pred_region
      %70 = dma.done [#allocation6], 32
    $region41: #{tpu_custom_call.1} parent=1 // pred_fallthru
      _
    // Predicated region
    $region42: #{tpu_custom_call.1} parent=1 // pred_check
      _
    $region43: #{tpu_custom_call.1} parent=1 // pred_check_branch
      %72 = sbr.rel (0) target = $region45
    $region44: #{tpu_custom_call.1} parent=1 // pred_region
      %73 = dma.done [#allocation6], 1280
    $region45: #{tpu_custom_call.1} parent=1 // pred_fallthru
      _
    // Predicated region
    $region46: #{tpu_custom_call.1} parent=1 // pred_check
      _
    $region47: #{tpu_custom_call.1} parent=1 // pred_check_branch
      %75 = sbr.rel (0) target = $region49
    $region48: #{tpu_custom_call.1} parent=1 // pred_region
      %76 = dma.done [#allocation9], 1280
    $region49: #{tpu_custom_call.1} parent=1 // pred_fallthru
      _
    %v77 = vld [vmem:[#allocation2] sm:$0x3]
    %v78 = vld [vmem:[%s4] sm:$0x3]
    %v79 = vsub.f32 %v77, 1.0
    %v80 = vmul.f32 %v79, %v79
    %v81 = vmul.f32 %v78, %v78
    %v82 = vadd.f32 %v80, %v81
    %vm83 = vcmask 517120
    %v84 = vsel %vm83, %v82, 0.0
    %85 = vadd.xlane.f32.xlu0 %v84
    %v86 = vpop.xlane.xlu0 %85
    %v87 = vrot.slane %v86, 4
    %v88 = vadd.f32 %v86, %v87
    %v89 = vrot.slane %v88, 2
    %v90 = vadd.f32 %v88, %v89
    %v91 = vrot.slane %v90, 1
    %v92 = vadd.f32 %v90, %v91
    %s93 = vtos %v92
    %s94 = smul.f32 %s93, 0.0078125
    %s95 = sadd.f32 %s94, 0.0
    %v96 = vld [vmem:[#allocation5] sm:$0x3]
    %v97 = vld [vmem:[%s5] sm:$0x3]
    %v98 = vsub.f32 %v96, 1.0
    %v99 = vmul.f32 %v98, %v98
    %v100 = vmul.f32 %v97, %v97
    %v101 = vadd.f32 %v99, %v100
    %vm102 = vcmask 254976
    %v103 = vsel %vm102, %v101, 0.0
    %104 = vadd.xlane.f32.xlu0 %v103
    %v105 = vpop.xlane.xlu0 %104
    %v106 = vrot.slane %v105, 4
    %v107 = vadd.f32 %v105, %v106
    %v108 = vrot.slane %v107, 2
    %v109 = vadd.f32 %v107, %v108
    %v110 = vrot.slane %v109, 1
    %v111 = vadd.f32 %v109, %v110
    %s112 = vtos %v111
    %s113 = smul.f32 %s112, 0.015625
    %s114 = sadd.f32 %s95, %s113
    %v115 = vld [vmem:[%s2] sm:$0x3]
    %v116 = vld [vmem:[%s6] sm:$0x3]
    %v117 = vsub.f32 %v115, 1.0
    %v118 = vmul.f32 %v117, %v117
    %v119 = vmul.f32 %v116, %v116
    %v120 = vadd.f32 %v118, %v119
    %vm121 = vcmask 123904
    %v122 = vsel %vm121, %v120, 0.0
    %123 = vadd.xlane.f32.xlu0 %v122
    %v124 = vpop.xlane.xlu0 %123
    %v125 = vrot.slane %v124, 4
    %v126 = vadd.f32 %v124, %v125
    %v127 = vrot.slane %v126, 2
    %v128 = vadd.f32 %v126, %v127
    %v129 = vrot.slane %v128, 1
    %v130 = vadd.f32 %v128, %v129
    %s131 = vtos %v130
    %s132 = smul.f32 %s131, 0.03125
    %s133 = sadd.f32 %s114, %s132
    %v134 = vld [vmem:[#allocation7] sm:$0xff]
    %v135 = vld [vmem:[#allocation7 + $0x8] sm:$0xff]
    %v136 = vld [vmem:[#allocation7 + $0x10] sm:$0xff]
    %v137 = vld [vmem:[#allocation7 + $0x18] sm:$0xff]
    %v138 = vld [vmem:[#allocation7 + $0x20] sm:$0xff]
    %v139 = vld [vmem:[#allocation7 + $0x28] sm:$0xff]
    %v140 = vld [vmem:[#allocation7 + $0x30] sm:$0xff]
    %v141 = vld [vmem:[#allocation7 + $0x38] sm:$0xff]
    %v142 = vld [vmem:[#allocation7 + $0x40] sm:$0xff]
    %v143 = vld [vmem:[#allocation7 + $0x48] sm:$0xff]
    %v144 = vld [vmem:[#allocation8] sm:$0xff]
    %v145 = vld [vmem:[#allocation8 + $0x8] sm:$0xff]
    %v146 = vld [vmem:[#allocation8 + $0x10] sm:$0xff]
    %v147 = vld [vmem:[#allocation8 + $0x18] sm:$0xff]
    %v148 = vld [vmem:[#allocation8 + $0x20] sm:$0xff]
    %v149 = vld [vmem:[#allocation8 + $0x28] sm:$0xff]
    %v150 = vld [vmem:[#allocation8 + $0x30] sm:$0xff]
    %v151 = vld [vmem:[#allocation8 + $0x38] sm:$0xff]
    %v152 = vld [vmem:[#allocation8 + $0x40] sm:$0xff]
    %v153 = vld [vmem:[#allocation8 + $0x48] sm:$0xff]
    %v154 = vsub.f32 %v134, 1.0
    %v155 = vsub.f32 %v135, 1.0
    %v156 = vsub.f32 %v136, 1.0
    %v157 = vsub.f32 %v137, 1.0
    %v158 = vsub.f32 %v138, 1.0
    %v159 = vsub.f32 %v139, 1.0
    %v160 = vsub.f32 %v140, 1.0
    %v161 = vsub.f32 %v141, 1.0
    %v162 = vsub.f32 %v142, 1.0
    %v163 = vsub.f32 %v143, 1.0
    %v164 = vmul.f32 %v154, %v154
    %v165 = vmul.f32 %v155, %v155
    %v166 = vmul.f32 %v156, %v156
    %v167 = vmul.f32 %v157, %v157
    %v168 = vmul.f32 %v158, %v158
    %v169 = vmul.f32 %v159, %v159
    %v170 = vmul.f32 %v160, %v160
    %v171 = vmul.f32 %v161, %v161
    %v172 = vmul.f32 %v162, %v162
    %v173 = vmul.f32 %v163, %v163
    %v174 = vmul.f32 %v144, %v144
    %v175 = vmul.f32 %v145, %v145
    %v176 = vmul.f32 %v146, %v146
    %v177 = vmul.f32 %v147, %v147
    %v178 = vmul.f32 %v148, %v148
    %v179 = vmul.f32 %v149, %v149
    %v180 = vmul.f32 %v150, %v150
    %v181 = vmul.f32 %v151, %v151
    %v182 = vmul.f32 %v152, %v152
    %v183 = vmul.f32 %v153, %v153
    %v184 = vadd.f32 %v164, %v174
    %v185 = vadd.f32 %v165, %v175
    %v186 = vadd.f32 %v166, %v176
    %v187 = vadd.f32 %v167, %v177
    %v188 = vadd.f32 %v168, %v178
    %v189 = vadd.f32 %v169, %v179
    %v190 = vadd.f32 %v170, %v180
    %v191 = vadd.f32 %v171, %v181
    %v192 = vadd.f32 %v172, %v182
    %v193 = vadd.f32 %v173, %v183
    %v204 = vcombine.high %v184, %v184
    %v206 = vunpack.c.l.s4 1983009808
    %v207 = vunpack.c.0.s8 %v206
    %v208 = vlaneseq
    %v209 = vshrl.u32 %v208, 7
    %v210 = vsub.s32 %v207, %v209
    %v211 = vrot.slane %v184, %v210
    %v213 = vunpack.c.l.s4 1983009808
    %v214 = vunpack.c.0.s8 %v213
    %v215 = vlaneseq
    %v216 = vshrl.u32 %v215, 7
    %v217 = vsub.s32 %v214, %v216
    %v218 = vrot.slane %v204, %v217
    %v219 = vcombine.high %v211, %v211
    %v220 = vcombine.high %v218, %v218
    %v221 = vcombine.high %v185, %v185
    %v223 = vunpack.c.l.s4 1983009808
    %v224 = vunpack.c.0.s8 %v223
    %v225 = vlaneseq
    %v226 = vshrl.u32 %v225, 7
    %v227 = vsub.s32 %v224, %v226
    %v228 = vrot.slane %v185, %v227
    %v230 = vunpack.c.l.s4 1983009808
    %v231 = vunpack.c.0.s8 %v230
    %v232 = vlaneseq
    %v233 = vshrl.u32 %v232, 7
    %v234 = vsub.s32 %v231, %v233
    %v235 = vrot.slane %v221, %v234
    %v236 = vcombine.high %v228, %v228
    %v237 = vcombine.high %v235, %v235
    %v238 = vcombine.high %v186, %v186
    %v240 = vunpack.c.l.s4 1983009808
    %v241 = vunpack.c.0.s8 %v240
    %v242 = vlaneseq
    %v243 = vshrl.u32 %v242, 7
    %v244 = vsub.s32 %v241, %v243
    %v245 = vrot.slane %v186, %v244
    %v247 = vunpack.c.l.s4 1983009808
    %v248 = vunpack.c.0.s8 %v247
    %v249 = vlaneseq
    %v250 = vshrl.u32 %v249, 7
    %v251 = vsub.s32 %v248, %v250
    %v252 = vrot.slane %v238, %v251
    %v253 = vcombine.high %v245, %v245
    %v254 = vcombine.high %v252, %v252
    %v255 = vcombine.high %v187, %v187
    %v257 = vunpack.c.l.s4 1983009808
    %v258 = vunpack.c.0.s8 %v257
    %v259 = vlaneseq
    %v260 = vshrl.u32 %v259, 7
    %v261 = vsub.s32 %v258, %v260
    %v262 = vrot.slane %v187, %v261
    %v264 = vunpack.c.l.s4 1983009808
    %v265 = vunpack.c.0.s8 %v264
    %v266 = vlaneseq
    %v267 = vshrl.u32 %v266, 7
    %v268 = vsub.s32 %v265, %v267
    %v269 = vrot.slane %v255, %v268
    %v270 = vcombine.high %v262, %v262
    %v271 = vcombine.high %v269, %v269
    %v272 = vcombine.high %v188, %v188
    %v274 = vunpack.c.l.s4 1983009808
    %v275 = vunpack.c.0.s8 %v274
    %v276 = vlaneseq
    %v277 = vshrl.u32 %v276, 7
    %v278 = vsub.s32 %v275, %v277
    %v279 = vrot.slane %v188, %v278
    %v281 = vunpack.c.l.s4 1983009808
    %v282 = vunpack.c.0.s8 %v281
    %v283 = vlaneseq
    %v284 = vshrl.u32 %v283, 7
    %v285 = vsub.s32 %v282, %v284
    %v286 = vrot.slane %v272, %v285
    %v287 = vcombine.high %v279, %v279
    %v288 = vcombine.high %v286, %v286
    %v289 = vcombine.high %v189, %v189
    %v291 = vunpack.c.l.s4 1983009808
    %v292 = vunpack.c.0.s8 %v291
    %v293 = vlaneseq
    %v294 = vshrl.u32 %v293, 7
    %v295 = vsub.s32 %v292, %v294
    %v296 = vrot.slane %v189, %v295
    %v298 = vunpack.c.l.s4 1983009808
    %v299 = vunpack.c.0.s8 %v298
    %v300 = vlaneseq
    %v301 = vshrl.u32 %v300, 7
    %v302 = vsub.s32 %v299, %v301
    %v303 = vrot.slane %v289, %v302
    %v304 = vcombine.high %v296, %v296
    %v305 = vcombine.high %v303, %v303
    %v306 = vcombine.high %v190, %v190
    %v308 = vunpack.c.l.s4 1983009808
    %v309 = vunpack.c.0.s8 %v308
    %v310 = vlaneseq
    %v311 = vshrl.u32 %v310, 7
    %v312 = vsub.s32 %v309, %v311
    %v313 = vrot.slane %v190, %v312
    %v315 = vunpack.c.l.s4 1983009808
    %v316 = vunpack.c.0.s8 %v315
    %v317 = vlaneseq
    %v318 = vshrl.u32 %v317, 7
    %v319 = vsub.s32 %v316, %v318
    %v320 = vrot.slane %v306, %v319
    %v321 = vcombine.high %v313, %v313
    %v322 = vcombine.high %v320, %v320
    %v323 = vcombine.high %v191, %v191
    %v325 = vunpack.c.l.s4 1983009808
    %v326 = vunpack.c.0.s8 %v325
    %v327 = vlaneseq
    %v328 = vshrl.u32 %v327, 7
    %v329 = vsub.s32 %v326, %v328
    %v330 = vrot.slane %v191, %v329
    %v332 = vunpack.c.l.s4 1983009808
    %v333 = vunpack.c.0.s8 %v332
    %v334 = vlaneseq
    %v335 = vshrl.u32 %v334, 7
    %v336 = vsub.s32 %v333, %v335
    %v337 = vrot.slane %v323, %v336
    %v338 = vcombine.high %v330, %v330
    %v339 = vcombine.high %v337, %v337
    %v340 = vcombine.high %v192, %v192
    %v342 = vunpack.c.l.s4 1983009808
    %v343 = vunpack.c.0.s8 %v342
    %v344 = vlaneseq
    %v345 = vshrl.u32 %v344, 7
    %v346 = vsub.s32 %v343, %v345
    %v347 = vrot.slane %v192, %v346
    %v349 = vunpack.c.l.s4 1983009808
    %v350 = vunpack.c.0.s8 %v349
    %v351 = vlaneseq
    %v352 = vshrl.u32 %v351, 7
    %v353 = vsub.s32 %v350, %v352
    %v354 = vrot.slane %v340, %v353
    %v355 = vcombine.high %v347, %v347
    %v356 = vcombine.high %v354, %v354
    %v357 = vcombine.high %v193, %v193
    %v359 = vunpack.c.l.s4 1983009808
    %v360 = vunpack.c.0.s8 %v359
    %v361 = vlaneseq
    %v362 = vshrl.u32 %v361, 7
    %v363 = vsub.s32 %v360, %v362
    %v364 = vrot.slane %v193, %v363
    %v366 = vunpack.c.l.s4 1983009808
    %v367 = vunpack.c.0.s8 %v366
    %v368 = vlaneseq
    %v369 = vshrl.u32 %v368, 7
    %v370 = vsub.s32 %v367, %v369
    %v371 = vrot.slane %v357, %v370
    %v372 = vcombine.high %v364, %v364
    %v373 = vcombine.high %v371, %v371
    %vm414 = vcmask 1041408
    %v415 = vsel %vm414, %v211, 0.0
    %v416 = vsel %vm414, %v219, 0.0
    %v417 = vadd.f32 %v415, %v416
    %v418 = vsel %vm414, %v218, 0.0
    %v419 = vadd.f32 %v417, %v418
    %v420 = vsel %vm414, %v220, 0.0
    %v421 = vadd.f32 %v419, %v420
    %v422 = vsel %vm414, %v228, 0.0
    %v423 = vadd.f32 %v421, %v422
    %v424 = vsel %vm414, %v236, 0.0
    %v425 = vadd.f32 %v423, %v424
    %v426 = vsel %vm414, %v235, 0.0
    %v427 = vadd.f32 %v425, %v426
    %v428 = vsel %vm414, %v237, 0.0
    %v429 = vadd.f32 %v427, %v428
    %v430 = vsel %vm414, %v245, 0.0
    %v431 = vadd.f32 %v429, %v430
    %v432 = vsel %vm414, %v253, 0.0
    %v433 = vadd.f32 %v431, %v432
    %v434 = vsel %vm414, %v252, 0.0
    %v435 = vadd.f32 %v433, %v434
    %v436 = vsel %vm414, %v254, 0.0
    %v437 = vadd.f32 %v435, %v436
    %v438 = vsel %vm414, %v262, 0.0
    %v439 = vadd.f32 %v437, %v438
    %v440 = vsel %vm414, %v270, 0.0
    %v441 = vadd.f32 %v439, %v440
    %v442 = vsel %vm414, %v269, 0.0
    %v443 = vadd.f32 %v441, %v442
    %v444 = vsel %vm414, %v271, 0.0
    %v445 = vadd.f32 %v443, %v444
    %v446 = vsel %vm414, %v279, 0.0
    %v447 = vadd.f32 %v445, %v446
    %v448 = vsel %vm414, %v287, 0.0
    %v449 = vadd.f32 %v447, %v448
    %v450 = vsel %vm414, %v286, 0.0
    %v451 = vadd.f32 %v449, %v450
    %v452 = vsel %vm414, %v288, 0.0
    %v453 = vadd.f32 %v451, %v452
    %v454 = vsel %vm414, %v296, 0.0
    %v455 = vadd.f32 %v453, %v454
    %v456 = vsel %vm414, %v304, 0.0
    %v457 = vadd.f32 %v455, %v456
    %v458 = vsel %vm414, %v303, 0.0
    %v459 = vadd.f32 %v457, %v458
    %v460 = vsel %vm414, %v305, 0.0
    %v461 = vadd.f32 %v459, %v460
    %v462 = vsel %vm414, %v313, 0.0
    %v463 = vadd.f32 %v461, %v462
    %v464 = vsel %vm414, %v321, 0.0
    %v465 = vadd.f32 %v463, %v464
    %v466 = vsel %vm414, %v320, 0.0
    %v467 = vadd.f32 %v465, %v466
    %v468 = vsel %vm414, %v322, 0.0
    %v469 = vadd.f32 %v467, %v468
    %v470 = vsel %vm414, %v330, 0.0
    %v471 = vadd.f32 %v469, %v470
    %v472 = vsel %vm414, %v338, 0.0
    %v473 = vadd.f32 %v471, %v472
    %v474 = vsel %vm414, %v337, 0.0
    %v475 = vadd.f32 %v473, %v474
    %v476 = vsel %vm414, %v339, 0.0
    %v477 = vadd.f32 %v475, %v476
    %v478 = vsel %vm414, %v347, 0.0
    %v479 = vadd.f32 %v477, %v478
    %v480 = vsel %vm414, %v355, 0.0
    %v481 = vadd.f32 %v479, %v480
    %v482 = vsel %vm414, %v354, 0.0
    %v483 = vadd.f32 %v481, %v482
    %v484 = vsel %vm414, %v356, 0.0
    %v485 = vadd.f32 %v483, %v484
    %v486 = vsel %vm414, %v364, 0.0
    %v487 = vadd.f32 %v485, %v486
    %v488 = vsel %vm414, %v372, 0.0
    %v489 = vadd.f32 %v487, %v488
    %v490 = vsel %vm414, %v371, 0.0
    %v491 = vadd.f32 %v489, %v490
    %vm492 = vcmask 58368
    %v493 = vsel %vm492, %v373, 0.0
    %v494 = vadd.f32 %v491, %v493
    %495 = vadd.xlane.f32.xlu0 %v494
    %v496 = vpop.xlane.xlu0 %495
    %v497 = vrot.slane %v496, 4
    %v498 = vadd.f32 %v496, %v497
    %v499 = vrot.slane %v498, 2
    %v500 = vadd.f32 %v498, %v499
    %v501 = vrot.slane %v500, 1
    %v502 = vadd.f32 %v500, %v501
    %s503 = vtos %v502
    %s504 = smul.f32 %s503, 0.0001
    %s505 = sadd.f32 %s133, %s504
    %v506 = vstv %s505
    %vm507 = vcmask 0
    %508 = vst.msk [vmem:[#allocation10] sm:$0x1] %vm507, %v506
    // Predicated region
    $region50: #{tpu_custom_call.1} parent=1 // pred_check
      _
    $region51: #{tpu_custom_call.1} parent=1 // pred_check_branch
      %510 = sbr.rel (0) target = $region53
    $region52: #{tpu_custom_call.1} parent=1 // pred_region
      %s512 = ssub.s32 16, 16
      %513 = vsyncadd [#allocation4], %s512
      %s515 = sshll.u32 [#allocation10], 4
      %s516 = int_to_ptr.vmem [resolvable:$true] %s515
      %518 = dma.vmem_to_hbm [thread:$0]  %s516, 16, %s8, [#allocation4]
    $region53: #{tpu_custom_call.1} parent=1 // pred_fallthru
      _
    // Predicated region
    $region54: #{tpu_custom_call.1} parent=1 // pred_check
      _
    $region55: #{tpu_custom_call.1} parent=1 // pred_check_branch
      %520 = sbr.rel (0) target = $region57
    $region56: #{tpu_custom_call.1} parent=1 // pred_region
      %521 = dma.done [#allocation4], 16
    $region57: #{tpu_custom_call.1} parent=1 // pred_fallthru
      _
    %522 = vsyncpa [#allocation3], 1
    %523 = vsyncpa [#allocation6], 1
    %524 = vsyncpa [#allocation9], 1
    %525 = vsyncpa [#allocation4], 1

</llo_original>
